<compile_context>
chip_gen: v7x
topology: tpu7x:2x2x1
jax: 0.10.0
libtpu: 0.0.40
codegen_flags: <defaults>
</compile_context>

<pallas_src>
import math

import numpy as np
import jax
import jax.numpy as jnp
from jax.experimental import pallas as pl
from jax.experimental.pallas import tpu as pltpu


def rope2d_kernel(pos_ref, table_ref, out_ref):
    """angle = pos_aug @ table on the MXU (f32-accurate), out = sin(angle)."""
    angle = jax.lax.dot_general(
        pos_ref[...], table_ref[...],
        dimension_numbers=(((1,), (0,)), ((), ())),
        preferred_element_type=jnp.float32,
        precision=jax.lax.Precision.HIGHEST,   # keep f32 accuracy before sin
    )
    out_ref[...] = jnp.sin(angle)


def _fold_factor(d_model):
    """Smallest g such that W = g*d_model is a multiple of 128 (capped)."""
    g = 128 // math.gcd(d_model, 128)
    if g > 1 and g * d_model > 4096:
        # Huge, awkward d_model: give up on folding (block last dim == full dim
        # is still legal; only the sub-128 tail store is masked).
        return 1
    return g


def _make_table(d_model, g):
    """(2g+1, W) table: rows 0..2g-1 select coord*inv_freq, last row = phase."""
    half = d_model // 2
    quarter = d_model // 4
    col = np.arange(d_model)
    freq_idx = (col % half) // 2                          # frequency index j
    inv_freq = 1.0 / (10000.0 ** (freq_idx.astype(np.float64) / quarter))
    phase = np.where(col % 2 == 0, 0.0, math.pi / 2.0)    # sin(x + pi/2) == cos(x)
    coord = (col >= half).astype(np.int64)                # 0 -> x, 1 -> y

    W = g * d_model
    K = 2 * g + 1
    tbl = np.zeros((K, W), dtype=np.float32)
    for r in range(g):
        for c in range(d_model):
            cf = r * d_model + c                          # folded column
            tbl[2 * r + coord[c], cf] = inv_freq[c]       # coord selection + freq
            tbl[K - 1, cf] = phase[c]                     # phase (paired w/ const-1)
    return jnp.asarray(tbl)


def rotary_positional_embedding(positions, d_model, tile_rows=4096):
    assert d_model % 4 == 0, "Embedding dimension must be divisible by 4."
    N = positions.shape[0]

    g = _fold_factor(d_model)
    W = g * d_model
    K = 2 * g + 1

    # Pad positions only up to a multiple of the fold factor (<= g-1 rows).
    n_rows = -(-N // g)
    n_pad = n_rows * g
    pos = positions.astype(jnp.float32)
    if n_pad != N:
        pos = jnp.pad(pos, ((0, n_pad - N), (0, 0)))

    # Row-major fold (free) + constant-1 column for the phase term (tiny copy).
    pos_folded = pos.reshape(n_rows, 2 * g)
    pos_aug = jnp.concatenate(
        [pos_folded, jnp.ones((n_rows, 1), jnp.float32)], axis=1)   # (n_rows, K)

    table = _make_table(d_model, g)                                  # (K, W)

    # VMEM budget: double-buffered output tile + double-buffered pos tile
    # (pos block lane-pads K up to 128 lanes).  Stay under 12 MiB total so we
    # fit v5e's 16 MiB default scoped VMEM without raising vmem_limit_bytes.
    bytes_per_row = 2 * 4 * (W + 128)
    budget = 12 << 20
    max_rows = max(8, (budget // bytes_per_row) // 8 * 8)
    tile_rows = max(8, (min(int(tile_rows), max_rows) // 8) * 8)
    # Don't over-tile tiny inputs (keep a multiple of 8 sublanes).
    tile_rows = min(tile_rows, max(8, -(-n_rows // 8) * 8))

    grid = (pl.cdiv(n_rows, tile_rows),)   # ragged last block handled by Pallas
    out = pl.pallas_call(
        rope2d_kernel,
        out_shape=jax.ShapeDtypeStruct((n_rows, W), jnp.float32),
        grid_spec=pl.GridSpec(
            grid=grid,
            in_specs=[
                pl.BlockSpec((tile_rows, K), lambda i: (i, 0)),
                pl.BlockSpec((K, W), lambda i: (0, 0)),   # tiny, resident table
            ],
            out_specs=pl.BlockSpec((tile_rows, W), lambda i: (i, 0)),
        ),
        compiler_params=pltpu.CompilerParams(
            dimension_semantics=("parallel",),            # megacore split on v7x
        ),
    )(pos_aug, table)

    # Unfold: pure reshape; slice only when N wasn't a multiple of g.
    out = out.reshape(n_pad, d_model)
    if n_pad != N:
        out = out[:N]
    return out


def _reference(positions, d_model):
    """Pure-JAX port of the PyTorch forward, for correctness checking."""
    N = positions.shape[0]
    quarter = d_model // 4
    inv_freq = 1.0 / (10000.0 ** (jnp.arange(quarter, dtype=jnp.float32) / quarter))
    emb = jnp.zeros((N, d_model), dtype=jnp.float32)
    for i in range(2):
        pos = positions[:, i].astype(jnp.float32)
        sinusoid = pos[:, None] * inv_freq[None, :]
        start = i * d_model // 2
        end = (i + 1) * d_model // 2
        emb = emb.at[:, start:end:2].set(jnp.sin(sinusoid))
        emb = emb.at[:, start + 1:end:2].set(jnp.cos(sinusoid))
    return emb


if __name__ == "__main__":
    key = jax.random.PRNGKey(0)

    # Case 1: small d_model (folded path, W = 128), ragged N.
    d_model, N = 32, 16
    positions = jax.random.uniform(key, (N, 2), jnp.float32, 0.0, 64.0)
    out = jax.block_until_ready(rotary_positional_embedding(positions, d_model))
    ref = _reference(positions, d_model)
    assert out.shape == (N, d_model) and out.dtype == jnp.float32
    assert jnp.allclose(out, ref, atol=1e-5, rtol=1e-5)

    # Case 2: d_model >= 128 (g = 1), N not a multiple of 8.
    d2, N2 = 128, 37
    pos2 = jax.random.uniform(jax.random.PRNGKey(1), (N2, 2), jnp.float32, 0.0, 100.0)
    out2 = jax.block_until_ready(rotary_positional_embedding(pos2, d2))
    assert jnp.allclose(out2, _reference(pos2, d2), atol=1e-5, rtol=1e-5)

    # Case 3: d_model that does not divide 128 (generalized fold, W = 384).
    d3, N3 = 48, 50
    pos3 = jax.random.uniform(jax.random.PRNGKey(2), (N3, 2), jnp.float32, 0.0, 100.0)
    out3 = jax.block_until_ready(rotary_positional_embedding(pos3, d3))
    assert jnp.allclose(out3, _reference(pos3, d3), atol=1e-5, rtol=1e-5)

    print("KERNEL_OK")
</pallas_src>

<mosaic_0001>
module attributes {stable_mosaic.version = 11 : i64} {
  func.func @rope2d_kernel(%arg0: i32, %arg1: memref<8x9xf32, #tpu.memory_space<vmem>>, %arg2: memref<9x128xf32, #tpu.memory_space<vmem>>, %arg3: memref<8x128xf32, #tpu.memory_space<vmem>>) attributes {dimension_semantics = [#tpu.dimension_semantics<parallel>], iteration_bounds = array<i64: 1>, scalar_prefetch = 0 : i64, scratch_operands = 0 : i64, tpu.core_type = #tpu.core_type<tc>, window_params = [{transform_indices = @transform_0, window_bounds = array<i64: 8, 9>}, {pipeline_mode = #tpu.pipeline_mode<synchronous>, transform_indices = @transform_1, window_bounds = array<i64: 9, 128>}, {transform_indices = @transform_2, window_bounds = array<i64: 8, 128>}]} {
    %c0 = arith.constant 0 : index
    %c0_0 = arith.constant 0 : index
    %0 = vector.load %arg1[%c0, %c0_0] : memref<8x9xf32, #tpu.memory_space<vmem>>, vector<8x9xf32>
    %c0_1 = arith.constant 0 : index
    %c0_2 = arith.constant 0 : index
    %1 = vector.load %arg2[%c0_1, %c0_2] : memref<9x128xf32, #tpu.memory_space<vmem>>, vector<9x128xf32>
    %cst = arith.constant dense<0.000000e+00> : vector<8x128xf32>
    %2 = tpu.matmul %0, %1, %cst {dimension_numbers = #tpu.dot_dimension_numbers<[1], [0], [0], [1], [0, 0, 1, 1], [], []>, precision = #tpu.contract_precision<fp32>} : vector<8x9xf32>, vector<9x128xf32>, vector<8x128xf32> -> vector<8x128xf32>
    %3 = math.sin %2 : vector<8x128xf32>
    %c0_3 = arith.constant 0 : index
    %c0_4 = arith.constant 0 : index
    %4 = vector.load %arg3[%c0_3, %c0_4] : memref<8x128xf32, #tpu.memory_space<vmem>>, vector<8x128xf32>
    tpu.vector_store %arg3[%c0_3, %c0_4], %3 {strides = array<i32>} : memref<8x128xf32, #tpu.memory_space<vmem>>, vector<8x128xf32>,
    return
  }
  func.func @transform_0(%arg0: i32) -> (i32, i32) {
    %c0_i32 = arith.constant 0 : i32
    %c0_i32_0 = arith.constant 0 : i32
    return %arg0, %c0_i32 : i32, i32
  }
  func.func @transform_1(%arg0: i32) -> (i32, i32) {
    %c0_i32 = arith.constant 0 : i32
    %c0_i32_0 = arith.constant 0 : i32
    %c0_i32_1 = arith.constant 0 : i32
    return %c0_i32, %c0_i32_0 : i32, i32
  }
  func.func @transform_2(%arg0: i32) -> (i32, i32) {
    %c0_i32 = arith.constant 0 : i32
    %c0_i32_0 = arith.constant 0 : i32
    return %arg0, %c0_i32 : i32, i32
  }
}

</mosaic_0001>

<llo_original>
// kernel: tpu_custom_call.1
$region0: #{tpu_custom_call.1}
  #allocation0 [shape = 'u32[]', space=smem, size = 0x4, offset = 0x4, fixed_abs, tag = 'smem constant byte address 0x4 - core index']
  #allocation1 [shape = 'u32[144,128]{1,0:T(1,128)}', space=vmem, size = 0x12000, scoped, tag = 'internal scratch']
  %s0 = inlined_call_operand.hbm [shape: f32[4,9], index: 0, kind: input, shape index: {}]
  %s1 = inlined_call_operand.hbm [shape: f32[9,128], index: 1, kind: input, shape index: {}]
  %s2 = inlined_call_operand.hbm [shape: f32[4,128], index: 2, kind: output, shape index: {}]
  %s3 = sld [smem:[#allocation0]]
  $region26: #{tpu_custom_call.1} parent=0
    _
  %s5 = ssub.s32 1, %s3
  %s6 = scalar_select 0, %s5, %s3
  $region1: #{tpu_custom_call.1} parent=0
    #allocation2 [shape = 'u8[4096]{0}', space=vmem, size = 0x1000, scoped, tag = 'input window, operand 0, single buffered']
    #allocation3 [shape = 's32[1]{0}', space=sflag, size = 0x4, scoped, tag = 'scoped memory for tpu_custom_call.1']
    #allocation4 [shape = 's32[1]{0}', space=sflag, size = 0x4, scoped, tag = 'scoped memory for tpu_custom_call.1']
    #allocation5 [shape = 'u8[8192]{0}', space=vmem, size = 0x2000, scoped, tag = 'input window, operand 1, single buffered']
    #allocation6 [shape = 's32[1]{0}', space=sflag, size = 0x4, scoped, tag = 'scoped memory for tpu_custom_call.1']
    #allocation7 [shape = 'u8[4096]{0}', space=vmem, size = 0x1000, scoped, tag = 'output window, operand 0, single buffered']
    %7 = vsyncpa [#allocation3], 0
    %8 = vsyncpa [#allocation6], 0
    %9 = vsyncpa [#allocation4], 0
    // Predicated region
    $region2: #{tpu_custom_call.1} parent=1 // pred_check
      _
    $region3: #{tpu_custom_call.1} parent=1 // pred_check_branch
      %11 = sbr.rel (0) target = $region5
    $region4: #{tpu_custom_call.1} parent=1 // pred_region
      %s13 = ssub.s32 128, 64
      %14 = vsyncadd [#allocation3], %s13
      %s15 = sshll.u32 [#allocation2], 4
      %s16 = int_to_ptr.vmem [resolvable:$true] %s15
      %21 = dma.hbm_to_vmem [thread:$0]  %s0, 64, %s16, [#allocation3], 64, 64, 4
    $region5: #{tpu_custom_call.1} parent=1 // pred_fallthru
      _
    // Predicated region
    $region6: #{tpu_custom_call.1} parent=1 // pred_check
      _
    $region7: #{tpu_custom_call.1} parent=1 // pred_check_branch
      %23 = sbr.rel (0) target = $region9
    $region8: #{tpu_custom_call.1} parent=1 // pred_region
      %s25 = ssub.s32 256, 256
      %26 = vsyncadd [#allocation6], %s25
      %s27 = sshll.u32 [#allocation5], 4
      %s28 = int_to_ptr.vmem [resolvable:$true] %s27
      %33 = dma.hbm_to_vmem [thread:$0]  %s1, 256, %s28, [#allocation6], 128, 128, 8
    $region9: #{tpu_custom_call.1} parent=1 // pred_fallthru
      _
    // Predicated region
    $region10: #{tpu_custom_call.1} parent=1 // pred_check
      _
    $region11: #{tpu_custom_call.1} parent=1 // pred_check_branch
      %35 = sbr.rel (0) target = $region13
    $region12: #{tpu_custom_call.1} parent=1 // pred_region
      %36 = dma.done [#allocation3], 128
    $region13: #{tpu_custom_call.1} parent=1 // pred_fallthru
      _
    // Predicated region
    $region14: #{tpu_custom_call.1} parent=1 // pred_check
      _
    $region15: #{tpu_custom_call.1} parent=1 // pred_check_branch
      %38 = sbr.rel (0) target = $region17
    $region16: #{tpu_custom_call.1} parent=1 // pred_region
      %39 = dma.done [#allocation6], 256
    $region17: #{tpu_custom_call.1} parent=1 // pred_fallthru
      _
    %v40 = vld [vmem:[#allocation2] sm:$0xff]
    %v41 = vld [vmem:[#allocation5] sm:$0xff]
    %v42 = vld [vmem:[#allocation5 + $0x8] sm:$0x1]
    %vm43 = vcmask 72704
    %v45 = vsel %vm43, %v40, 0
    %vm47 = vcmask 1040384
    %v49 = vsel %vm47, %v42, 0
    %51 = vmatprep.subr.mxu0 0.0
    %v52 = vand.u32 %v41, 4294901760
    %53 = vmatpush1.msra.mxu0 %v52
    %54 = vmatprep.subr.mxu0 0.0
    %v55 = vand.u32 %v49, 4294901760
    %56 = vmatpush1.msra.mxu0 %v55
    %57 = vmatprep.subr.mxu0 0.0
    %58 = vmatpush1.msra.mxu0 0.0
    %59 = vmatprep.subr.mxu0 0.0
    %60 = vmatpush1.msra.mxu0 0.0
    %61 = vmatprep.subr.mxu0 0.0
    %62 = vmatpush1.msra.mxu0 0.0
    %63 = vmatprep.subr.mxu0 0.0
    %64 = vmatpush1.msra.mxu0 0.0
    %65 = vmatprep.subr.mxu0 0.0
    %66 = vmatpush1.msra.mxu0 0.0
    %67 = vmatprep.subr.mxu0 0.0
    %68 = vmatpush1.msra.mxu0 0.0
    %69 = vmatprep.subr.mxu0 0.0
    %70 = vmatpush1.msra.mxu0 0.0
    %71 = vmatprep.subr.mxu0 0.0
    %72 = vmatpush1.msra.mxu0 0.0
    %73 = vmatprep.subr.mxu0 0.0
    %74 = vmatpush1.msra.mxu0 0.0
    %75 = vmatprep.subr.mxu0 0.0
    %76 = vmatpush1.msra.mxu0 0.0
    %77 = vmatprep.subr.mxu0 0.0
    %78 = vmatpush1.msra.mxu0 0.0
    %79 = vmatprep.subr.mxu0 0.0
    %80 = vmatpush1.msra.mxu0 0.0
    %81 = vmatprep.subr.mxu0 0.0
    %82 = vmatpush1.msra.mxu0 0.0
    %83 = vmatprep.subr.mxu0 0.0
    %84 = vmatpush1.msra.mxu0 0.0
    %85 = vmatprep.subr.mxu0 0.0
    %86 = vmatpush1.msra.mxu0 0.0
    %87 = vmatprep.subr.mxu0 0.0
    %88 = vmatpush1.msra.mxu0 0.0
    %89 = vmatprep.subr.mxu0 0.0
    %90 = vmatpush1.msra.mxu0 0.0
    %91 = vmatprep.subr.mxu0 0.0
    %92 = vmatpush1.msra.mxu0 0.0
    %93 = vmatprep.subr.mxu0 0.0
    %94 = vmatpush1.msra.mxu0 0.0
    %95 = vmatprep.subr.mxu0 0.0
    %96 = vmatpush1.msra.mxu0 0.0
    %97 = vmatprep.subr.mxu0 0.0
    %98 = vmatpush1.msra.mxu0 0.0
    %99 = vmatprep.subr.mxu0 0.0
    %100 = vmatpush1.msra.mxu0 0.0
    %101 = vmatprep.subr.mxu0 0.0
    %102 = vmatpush1.msra.mxu0 0.0
    %103 = vmatprep.subr.mxu0 0.0
    %104 = vmatpush1.msra.mxu0 0.0
    %105 = vmatprep.subr.mxu0 0.0
    %106 = vmatpush1.msra.mxu0 0.0
    %107 = vmatprep.subr.mxu0 0.0
    %108 = vmatpush1.msra.mxu0 0.0
    %109 = vmatprep.subr.mxu0 0.0
    %110 = vmatpush1.msra.mxu0 0.0
    %111 = vmatprep.subr.mxu0 0.0
    %112 = vmatpush1.msra.mxu0 0.0
    %113 = vmatprep.subr.mxu0 0.0
    %114 = vmatpush1.msra.mxu0 0.0
    %115 = vmatprep.subr.mxu0 0.0
    %116 = vmatpush1.msra.mxu0 0.0
    %117 = vmatprep.mubr.f32.mxu0 0.0
    %v118 = vand.u32 %v45, 4294901760
    %v119 = vsub.f32 %v45, %v118
    %v120 = vand.u32 %v119, 4294901760
    %v121 = vsub.f32 %v119, %v120
    %v122 = vand.u32 %v121, 4294901760
    %123 = vmatmul.mubr.f32.gmra.mrb[0].mxu0 %v122
    %v124 = vpop.f32.mrb[0].mxu0
    %v125 = vadd.f32 0.0, %v124
    %v126 = vpop.f32.mrb[0].mxu0
    %127 = vdwg.mxu0
    %128 = vmatprep.subr.mxu0 0.0
    %v129 = vand.u32 %v41, 4294901760
    %v130 = vsub.f32 %v41, %v129
    %v131 = vand.u32 %v130, 4294901760
    %v132 = vsub.f32 %v130, %v131
    %v133 = vand.u32 %v132, 4294901760
    %134 = vmatpush1.msra.mxu0 %v133
    %135 = vmatprep.subr.mxu0 0.0
    %v136 = vand.u32 %v49, 4294901760
    %v137 = vsub.f32 %v49, %v136
    %v138 = vand.u32 %v137, 4294901760
    %v139 = vsub.f32 %v137, %v138
    %v140 = vand.u32 %v139, 4294901760
    %141 = vmatpush1.msra.mxu0 %v140
    %142 = vmatprep.subr.mxu0 0.0
    %143 = vmatpush1.msra.mxu0 0.0
    %144 = vmatprep.subr.mxu0 0.0
    %145 = vmatpush1.msra.mxu0 0.0
    %146 = vmatprep.subr.mxu0 0.0
    %147 = vmatpush1.msra.mxu0 0.0
    %148 = vmatprep.subr.mxu0 0.0
    %149 = vmatpush1.msra.mxu0 0.0
    %150 = vmatprep.subr.mxu0 0.0
    %151 = vmatpush1.msra.mxu0 0.0
    %152 = vmatprep.subr.mxu0 0.0
    %153 = vmatpush1.msra.mxu0 0.0
    %154 = vmatprep.subr.mxu0 0.0
    %155 = vmatpush1.msra.mxu0 0.0
    %156 = vmatprep.subr.mxu0 0.0
    %157 = vmatpush1.msra.mxu0 0.0
    %158 = vmatprep.subr.mxu0 0.0
    %159 = vmatpush1.msra.mxu0 0.0
    %160 = vmatprep.subr.mxu0 0.0
    %161 = vmatpush1.msra.mxu0 0.0
    %162 = vmatprep.subr.mxu0 0.0
    %163 = vmatpush1.msra.mxu0 0.0
    %164 = vmatprep.subr.mxu0 0.0
    %165 = vmatpush1.msra.mxu0 0.0
    %166 = vmatprep.subr.mxu0 0.0
    %167 = vmatpush1.msra.mxu0 0.0
    %168 = vmatprep.subr.mxu0 0.0
    %169 = vmatpush1.msra.mxu0 0.0
    %170 = vmatprep.subr.mxu0 0.0
    %171 = vmatpush1.msra.mxu0 0.0
    %172 = vmatprep.subr.mxu0 0.0
    %173 = vmatpush1.msra.mxu0 0.0
    %174 = vmatprep.subr.mxu0 0.0
    %175 = vmatpush1.msra.mxu0 0.0
    %176 = vmatprep.subr.mxu0 0.0
    %177 = vmatpush1.msra.mxu0 0.0
    %178 = vmatprep.subr.mxu0 0.0
    %179 = vmatpush1.msra.mxu0 0.0
    %180 = vmatprep.subr.mxu0 0.0
    %181 = vmatpush1.msra.mxu0 0.0
    %182 = vmatprep.subr.mxu0 0.0
    %183 = vmatpush1.msra.mxu0 0.0
    %184 = vmatprep.subr.mxu0 0.0
    %185 = vmatpush1.msra.mxu0 0.0
    %186 = vmatprep.subr.mxu0 0.0
    %187 = vmatpush1.msra.mxu0 0.0
    %188 = vmatprep.subr.mxu0 0.0
    %189 = vmatpush1.msra.mxu0 0.0
    %190 = vmatprep.subr.mxu0 0.0
    %191 = vmatpush1.msra.mxu0 0.0
    %192 = vmatprep.subr.mxu0 0.0
    %193 = vmatpush1.msra.mxu0 0.0
    %194 = vmatprep.subr.mxu0 0.0
    %195 = vmatpush1.msra.mxu0 0.0
    %196 = vmatprep.subr.mxu0 0.0
    %197 = vmatpush1.msra.mxu0 0.0
    %198 = vmatprep.subr.mxu0 0.0
    %199 = vmatpush1.msra.mxu0 0.0
    %200 = vmatprep.subr.mxu0 0.0
    %201 = vmatpush1.msra.mxu0 0.0
    %202 = vmatprep.mubr.f32.mxu0 0.0
    %v203 = vand.u32 %v45, 4294901760
    %204 = vmatmul.mubr.f32.gmra.mrb[0].mxu0 %v203
    %v205 = vpop.f32.mrb[0].mxu0
    %v206 = vadd.f32 %v125, %v205
    %v207 = vpop.f32.mrb[0].mxu0
    %208 = vdwg.mxu0
    %209 = vmatprep.subr.mxu0 0.0
    %v210 = vand.u32 %v41, 4294901760
    %v211 = vsub.f32 %v41, %v210
    %212 = vmatpush1.msra.mxu0 %v211
    %213 = vmatprep.subr.mxu0 0.0
    %v214 = vand.u32 %v49, 4294901760
    %v215 = vsub.f32 %v49, %v214
    %216 = vmatpush1.msra.mxu0 %v215
    %217 = vmatprep.subr.mxu0 0.0
    %218 = vmatpush1.msra.mxu0 0.0
    %219 = vmatprep.subr.mxu0 0.0
    %220 = vmatpush1.msra.mxu0 0.0
    %221 = vmatprep.subr.mxu0 0.0
    %222 = vmatpush1.msra.mxu0 0.0
    %223 = vmatprep.subr.mxu0 0.0
    %224 = vmatpush1.msra.mxu0 0.0
    %225 = vmatprep.subr.mxu0 0.0
    %226 = vmatpush1.msra.mxu0 0.0
    %227 = vmatprep.subr.mxu0 0.0
    %228 = vmatpush1.msra.mxu0 0.0
    %229 = vmatprep.subr.mxu0 0.0
    %230 = vmatpush1.msra.mxu0 0.0
    %231 = vmatprep.subr.mxu0 0.0
    %232 = vmatpush1.msra.mxu0 0.0
    %233 = vmatprep.subr.mxu0 0.0
    %234 = vmatpush1.msra.mxu0 0.0
    %235 = vmatprep.subr.mxu0 0.0
    %236 = vmatpush1.msra.mxu0 0.0
    %237 = vmatprep.subr.mxu0 0.0
    %238 = vmatpush1.msra.mxu0 0.0
    %239 = vmatprep.subr.mxu0 0.0
    %240 = vmatpush1.msra.mxu0 0.0
    %241 = vmatprep.subr.mxu0 0.0
    %242 = vmatpush1.msra.mxu0 0.0
    %243 = vmatprep.subr.mxu0 0.0
    %244 = vmatpush1.msra.mxu0 0.0
    %245 = vmatprep.subr.mxu0 0.0
    %246 = vmatpush1.msra.mxu0 0.0
    %247 = vmatprep.subr.mxu0 0.0
    %248 = vmatpush1.msra.mxu0 0.0
    %249 = vmatprep.subr.mxu0 0.0
    %250 = vmatpush1.msra.mxu0 0.0
    %251 = vmatprep.subr.mxu0 0.0
    %252 = vmatpush1.msra.mxu0 0.0
    %253 = vmatprep.subr.mxu0 0.0
    %254 = vmatpush1.msra.mxu0 0.0
    %255 = vmatprep.subr.mxu0 0.0
    %256 = vmatpush1.msra.mxu0 0.0
    %257 = vmatprep.subr.mxu0 0.0
    %258 = vmatpush1.msra.mxu0 0.0
    %259 = vmatprep.subr.mxu0 0.0
    %260 = vmatpush1.msra.mxu0 0.0
    %261 = vmatprep.subr.mxu0 0.0
    %262 = vmatpush1.msra.mxu0 0.0
    %263 = vmatprep.subr.mxu0 0.0
    %264 = vmatpush1.msra.mxu0 0.0
    %265 = vmatprep.subr.mxu0 0.0
    %266 = vmatpush1.msra.mxu0 0.0
    %267 = vmatprep.subr.mxu0 0.0
    %268 = vmatpush1.msra.mxu0 0.0
    %269 = vmatprep.subr.mxu0 0.0
    %270 = vmatpush1.msra.mxu0 0.0
    %271 = vmatprep.subr.mxu0 0.0
    %272 = vmatpush1.msra.mxu0 0.0
    %273 = vmatprep.subr.mxu0 0.0
    %274 = vmatpush1.msra.mxu0 0.0
    %275 = vmatprep.subr.mxu0 0.0
    %276 = vmatpush1.msra.mxu0 0.0
    %277 = vmatprep.mubr.f32.mxu0 0.0
    %v278 = vand.u32 %v45, 4294901760
    %v279 = vsub.f32 %v45, %v278
    %280 = vmatmul.mubr.f32.gmra.mrb[0].mxu0 %v279
    %v281 = vpop.f32.mrb[0].mxu0
    %v282 = vadd.f32 %v206, %v281
    %v283 = vpop.f32.mrb[0].mxu0
    %284 = vdwg.mxu0
    %285 = vmatprep.subr.mxu0 0.0
    %v286 = vand.u32 %v41, 4294901760
    %287 = vmatpush1.msra.mxu0 %v286
    %288 = vmatprep.subr.mxu0 0.0
    %v289 = vand.u32 %v49, 4294901760
    %290 = vmatpush1.msra.mxu0 %v289
    %291 = vmatprep.subr.mxu0 0.0
    %292 = vmatpush1.msra.mxu0 0.0
    %293 = vmatprep.subr.mxu0 0.0
    %294 = vmatpush1.msra.mxu0 0.0
    %295 = vmatprep.subr.mxu0 0.0
    %296 = vmatpush1.msra.mxu0 0.0
    %297 = vmatprep.subr.mxu0 0.0
    %298 = vmatpush1.msra.mxu0 0.0
    %299 = vmatprep.subr.mxu0 0.0
    %300 = vmatpush1.msra.mxu0 0.0
    %301 = vmatprep.subr.mxu0 0.0
    %302 = vmatpush1.msra.mxu0 0.0
    %303 = vmatprep.subr.mxu0 0.0
    %304 = vmatpush1.msra.mxu0 0.0
    %305 = vmatprep.subr.mxu0 0.0
    %306 = vmatpush1.msra.mxu0 0.0
    %307 = vmatprep.subr.mxu0 0.0
    %308 = vmatpush1.msra.mxu0 0.0
    %309 = vmatprep.subr.mxu0 0.0
    %310 = vmatpush1.msra.mxu0 0.0
    %311 = vmatprep.subr.mxu0 0.0
    %312 = vmatpush1.msra.mxu0 0.0
    %313 = vmatprep.subr.mxu0 0.0
    %314 = vmatpush1.msra.mxu0 0.0
    %315 = vmatprep.subr.mxu0 0.0
    %316 = vmatpush1.msra.mxu0 0.0
    %317 = vmatprep.subr.mxu0 0.0
    %318 = vmatpush1.msra.mxu0 0.0
    %319 = vmatprep.subr.mxu0 0.0
    %320 = vmatpush1.msra.mxu0 0.0
    %321 = vmatprep.subr.mxu0 0.0
    %322 = vmatpush1.msra.mxu0 0.0
    %323 = vmatprep.subr.mxu0 0.0
    %324 = vmatpush1.msra.mxu0 0.0
    %325 = vmatprep.subr.mxu0 0.0
    %326 = vmatpush1.msra.mxu0 0.0
    %327 = vmatprep.subr.mxu0 0.0
    %328 = vmatpush1.msra.mxu0 0.0
    %329 = vmatprep.subr.mxu0 0.0
    %330 = vmatpush1.msra.mxu0 0.0
    %331 = vmatprep.subr.mxu0 0.0
    %332 = vmatpush1.msra.mxu0 0.0
    %333 = vmatprep.subr.mxu0 0.0
    %334 = vmatpush1.msra.mxu0 0.0
    %335 = vmatprep.subr.mxu0 0.0
    %336 = vmatpush1.msra.mxu0 0.0
    %337 = vmatprep.subr.mxu0 0.0
    %338 = vmatpush1.msra.mxu0 0.0
    %339 = vmatprep.subr.mxu0 0.0
    %340 = vmatpush1.msra.mxu0 0.0
    %341 = vmatprep.subr.mxu0 0.0
    %342 = vmatpush1.msra.mxu0 0.0
    %343 = vmatprep.subr.mxu0 0.0
    %344 = vmatpush1.msra.mxu0 0.0
    %345 = vmatprep.subr.mxu0 0.0
    %346 = vmatpush1.msra.mxu0 0.0
    %347 = vmatprep.subr.mxu0 0.0
    %348 = vmatpush1.msra.mxu0 0.0
    %349 = vmatprep.subr.mxu0 0.0
    %350 = vmatpush1.msra.mxu0 0.0
    %351 = vmatprep.mubr.f32.mxu0 0.0
    %v352 = vand.u32 %v45, 4294901760
    %v353 = vsub.f32 %v45, %v352
    %v354 = vand.u32 %v353, 4294901760
    %355 = vmatmul.mubr.f32.gmra.mrb[0].mxu0 %v354
    %v356 = vpop.f32.mrb[0].mxu0
    %v357 = vadd.f32 %v282, %v356
    %v358 = vpop.f32.mrb[0].mxu0
    %359 = vdwg.mxu0
    %360 = vmatprep.subr.mxu0 0.0
    %v361 = vand.u32 %v41, 4294901760
    %v362 = vsub.f32 %v41, %v361
    %v363 = vand.u32 %v362, 4294901760
    %364 = vmatpush1.msra.mxu0 %v363
    %365 = vmatprep.subr.mxu0 0.0
    %v366 = vand.u32 %v49, 4294901760
    %v367 = vsub.f32 %v49, %v366
    %v368 = vand.u32 %v367, 4294901760
    %369 = vmatpush1.msra.mxu0 %v368
    %370 = vmatprep.subr.mxu0 0.0
    %371 = vmatpush1.msra.mxu0 0.0
    %372 = vmatprep.subr.mxu0 0.0
    %373 = vmatpush1.msra.mxu0 0.0
    %374 = vmatprep.subr.mxu0 0.0
    %375 = vmatpush1.msra.mxu0 0.0
    %376 = vmatprep.subr.mxu0 0.0
    %377 = vmatpush1.msra.mxu0 0.0
    %378 = vmatprep.subr.mxu0 0.0
    %379 = vmatpush1.msra.mxu0 0.0
    %380 = vmatprep.subr.mxu0 0.0
    %381 = vmatpush1.msra.mxu0 0.0
    %382 = vmatprep.subr.mxu0 0.0
    %383 = vmatpush1.msra.mxu0 0.0
    %384 = vmatprep.subr.mxu0 0.0
    %385 = vmatpush1.msra.mxu0 0.0
    %386 = vmatprep.subr.mxu0 0.0
    %387 = vmatpush1.msra.mxu0 0.0
    %388 = vmatprep.subr.mxu0 0.0
    %389 = vmatpush1.msra.mxu0 0.0
    %390 = vmatprep.subr.mxu0 0.0
    %391 = vmatpush1.msra.mxu0 0.0
    %392 = vmatprep.subr.mxu0 0.0
    %393 = vmatpush1.msra.mxu0 0.0
    %394 = vmatprep.subr.mxu0 0.0
    %395 = vmatpush1.msra.mxu0 0.0
    %396 = vmatprep.subr.mxu0 0.0
    %397 = vmatpush1.msra.mxu0 0.0
    %398 = vmatprep.subr.mxu0 0.0
    %399 = vmatpush1.msra.mxu0 0.0
    %400 = vmatprep.subr.mxu0 0.0
    %401 = vmatpush1.msra.mxu0 0.0
    %402 = vmatprep.subr.mxu0 0.0
    %403 = vmatpush1.msra.mxu0 0.0
    %404 = vmatprep.subr.mxu0 0.0
    %405 = vmatpush1.msra.mxu0 0.0
    %406 = vmatprep.subr.mxu0 0.0
    %407 = vmatpush1.msra.mxu0 0.0
    %408 = vmatprep.subr.mxu0 0.0
    %409 = vmatpush1.msra.mxu0 0.0
    %410 = vmatprep.subr.mxu0 0.0
    %411 = vmatpush1.msra.mxu0 0.0
    %412 = vmatprep.subr.mxu0 0.0
    %413 = vmatpush1.msra.mxu0 0.0
    %414 = vmatprep.subr.mxu0 0.0
    %415 = vmatpush1.msra.mxu0 0.0
    %416 = vmatprep.subr.mxu0 0.0
    %417 = vmatpush1.msra.mxu0 0.0
    %418 = vmatprep.subr.mxu0 0.0
    %419 = vmatpush1.msra.mxu0 0.0
    %420 = vmatprep.subr.mxu0 0.0
    %421 = vmatpush1.msra.mxu0 0.0
    %422 = vmatprep.subr.mxu0 0.0
    %423 = vmatpush1.msra.mxu0 0.0
    %424 = vmatprep.subr.mxu0 0.0
    %425 = vmatpush1.msra.mxu0 0.0
    %426 = vmatprep.subr.mxu0 0.0
    %427 = vmatpush1.msra.mxu0 0.0
    %428 = vmatprep.subr.mxu0 0.0
    %429 = vmatpush1.msra.mxu0 0.0
    %430 = vmatprep.mubr.f32.mxu0 0.0
    %v431 = vand.u32 %v45, 4294901760
    %432 = vmatmul.mubr.f32.gmra.mrb[0].mxu0 %v431
    %v433 = vpop.f32.mrb[0].mxu0
    %v434 = vadd.f32 %v357, %v433
    %v435 = vpop.f32.mrb[0].mxu0
    %436 = vdwg.mxu0
    %437 = vmatprep.subr.mxu0 0.0
    %v438 = vand.u32 %v41, 4294901760
    %439 = vmatpush1.msra.mxu0 %v438
    %440 = vmatprep.subr.mxu0 0.0
    %v441 = vand.u32 %v49, 4294901760
    %442 = vmatpush1.msra.mxu0 %v441
    %443 = vmatprep.subr.mxu0 0.0
    %444 = vmatpush1.msra.mxu0 0.0
    %445 = vmatprep.subr.mxu0 0.0
    %446 = vmatpush1.msra.mxu0 0.0
    %447 = vmatprep.subr.mxu0 0.0
    %448 = vmatpush1.msra.mxu0 0.0
    %449 = vmatprep.subr.mxu0 0.0
    %450 = vmatpush1.msra.mxu0 0.0
    %451 = vmatprep.subr.mxu0 0.0
    %452 = vmatpush1.msra.mxu0 0.0
    %453 = vmatprep.subr.mxu0 0.0
    %454 = vmatpush1.msra.mxu0 0.0
    %455 = vmatprep.subr.mxu0 0.0
    %456 = vmatpush1.msra.mxu0 0.0
    %457 = vmatprep.subr.mxu0 0.0
    %458 = vmatpush1.msra.mxu0 0.0
    %459 = vmatprep.subr.mxu0 0.0
    %460 = vmatpush1.msra.mxu0 0.0
    %461 = vmatprep.subr.mxu0 0.0
    %462 = vmatpush1.msra.mxu0 0.0
    %463 = vmatprep.subr.mxu0 0.0
    %464 = vmatpush1.msra.mxu0 0.0
    %465 = vmatprep.subr.mxu0 0.0
    %466 = vmatpush1.msra.mxu0 0.0
    %467 = vmatprep.subr.mxu0 0.0
    %468 = vmatpush1.msra.mxu0 0.0
    %469 = vmatprep.subr.mxu0 0.0
    %470 = vmatpush1.msra.mxu0 0.0
    %471 = vmatprep.subr.mxu0 0.0
    %472 = vmatpush1.msra.mxu0 0.0
    %473 = vmatprep.subr.mxu0 0.0
    %474 = vmatpush1.msra.mxu0 0.0
    %475 = vmatprep.subr.mxu0 0.0
    %476 = vmatpush1.msra.mxu0 0.0
    %477 = vmatprep.subr.mxu0 0.0
    %478 = vmatpush1.msra.mxu0 0.0
    %479 = vmatprep.subr.mxu0 0.0
    %480 = vmatpush1.msra.mxu0 0.0
    %481 = vmatprep.subr.mxu0 0.0
    %482 = vmatpush1.msra.mxu0 0.0
    %483 = vmatprep.subr.mxu0 0.0
    %484 = vmatpush1.msra.mxu0 0.0
    %485 = vmatprep.subr.mxu0 0.0
    %486 = vmatpush1.msra.mxu0 0.0
    %487 = vmatprep.subr.mxu0 0.0
    %488 = vmatpush1.msra.mxu0 0.0
    %489 = vmatprep.subr.mxu0 0.0
    %490 = vmatpush1.msra.mxu0 0.0
    %491 = vmatprep.subr.mxu0 0.0
    %492 = vmatpush1.msra.mxu0 0.0
    %493 = vmatprep.subr.mxu0 0.0
    %494 = vmatpush1.msra.mxu0 0.0
    %495 = vmatprep.subr.mxu0 0.0
    %496 = vmatpush1.msra.mxu0 0.0
    %497 = vmatprep.subr.mxu0 0.0
    %498 = vmatpush1.msra.mxu0 0.0
    %499 = vmatprep.subr.mxu0 0.0
    %500 = vmatpush1.msra.mxu0 0.0
    %501 = vmatprep.subr.mxu0 0.0
    %502 = vmatpush1.msra.mxu0 0.0
    %503 = vmatprep.mubr.f32.mxu0 0.0
    %v504 = vand.u32 %v45, 4294901760
    %505 = vmatmul.mubr.f32.gmra.mrb[0].mxu0 %v504
    %v506 = vpop.f32.mrb[0].mxu0
    %v507 = vadd.f32 %v434, %v506
    %v508 = vpop.f32.mrb[0].mxu0
    %509 = vdwg.mxu0
    %v510 = vand.u32 2147483647, %v507
    %vm511 = vcmp.le.f32.partialorder %v510, 0.7853982
    %vm512 = vcmp.lt.s32.totalorder %v507, 0
    %v513 = vand.u32 %v507, 2139095040
    %v514 = vshrl.u32 %v513, 23
    %v515 = vsub.s32 %v514, 127
    %v516 = vand.u32 2147483647, %v507
    %v517 = vand.u32 %v516, 8388607
    %v518 = vor.u32 %v517, 8388608
    %v519 = vsub.s32 0, %v518
    %v520 = vadd.s32 %v515, 1
    %vm521 = vcmp.gt.s32.totalorder %v520, 0
    %v522 = vsel %vm521, %v520, 0
    %v523 = vshrl.u32 %v522, 5
    %v524 = vand.u32 %v522, 31
    %v525 = vsub.s32 32, %v524
    %v526 = vshrl.u32 683565275, %v525
    %v527 = vshll.u32 683565275, %v524
    %v528 = vshrl.u32 2475754826, %v525
    %v529 = vor.u32 %v527, %v528
    %v530 = vshll.u32 2475754826, %v524
    %v531 = vshrl.u32 2131351028, %v525
    %v532 = vor.u32 %v530, %v531
    %v533 = vshll.u32 2131351028, %v524
    %v534 = vshrl.u32 2102212464, %v525
    %v535 = vor.u32 %v533, %v534
    %v536 = vshll.u32 2102212464, %v524
    %v537 = vshrl.u32 920167782, %v525
    %v538 = vor.u32 %v536, %v537
    %v539 = vshll.u32 920167782, %v524
    %v540 = vshrl.u32 1326507024, %v525
    %v541 = vor.u32 %v539, %v540
    %vm542 = vcmp.lt.s32.totalorder %v523, 1
    %vm543 = vcmp.lt.s32.totalorder %v523, 2
    %vm544 = vcmp.lt.s32.totalorder %v523, 3
    %vm545 = vcmp.lt.s32.totalorder %v523, 4
    %v546 = vsel %vm542, %v526, %v529
    %v547 = vsel %vm545, %v535, 2102212464
    %v548 = vsel %vm544, %v532, %v547
    %v549 = vsel %vm543, %v546, %v548
    %v550 = vsel %vm542, %v529, %v532
    %v551 = vsel %vm545, %v538, 920167782
    %v552 = vsel %vm544, %v535, %v551
    %v553 = vsel %vm543, %v550, %v552
    %v554 = vsel %vm542, %v532, %v535
    %v555 = vsel %vm545, %v541, 1326507024
    %v556 = vsel %vm544, %v538, %v555
    %v557 = vsel %vm543, %v554, %v556
    %v558 = vshll.u32 %v518, 8
    %v559 = vmul.u32.u64.compose %v558, %v557
    %v560 = vextract.low.u32 %v559
    %v561 = vextract.high.u32 %v559
    %v562 = vmul.u32.u64.compose %v558, %v553
    %v563 = vextract.low.u32 %v562
    %v564 = vextract.high.u32 %v562
    %v565 = vmul.u32 %v558, %v549
    %v566 = vadd.s32 %v561, %v563
    %vm567 = vc.u32 %v561, %v563
    %v568 = vadd.s32 %v564, 1
    %v569 = vsel %vm567, %v568, %v564
    %v570 = vadd.s32 %v565, %v569
    %v571 = vadd.s32 %v570, 536870912
    %v572 = vshrl.u32 %v571, 30
    %v573 = vshll.u32 %v572, 30
    %v574 = vsub.s32 %v570, %v573
    %vm575 = vcmp.lt.s32.totalorder %v574, 0
    %v576 = vsub.s32 0, %v574
    %v577 = vsel %vm575, %v576, %v574
    %v578 = vclz %v577
    %v579 = vsub.s32 %v578, 2
    %vm580 = vcmp.gt.s32.totalorder 0, %v579
    %v581 = vsel %vm580, 0, %v579
    %v582 = vsub.s32 32, %v581
    %v583 = vshll.u32 %v574, %v581
    %v584 = vshrl.u32 %v566, %v582
    %v585 = vor.u32 %v583, %v584
    %v586 = vsub.s32 4294967266, %v581
    %v587 = vadd.s32 %v586, 127
    %v588 = vshll.u32 %v587, 23
    %v589 = vor.u32 4788187, %v588
    %v590 = vand.u32 2147483647, %v589
    %v592 = vcvt.s32.f32 %v585
    %v593 = vmul.f32 %v592, %v590
    %v594 = vxor.u32 %v593, 2147483648
    %v595 = vsel %vm512, %v594, %v593
    %v596 = vsub.s32 4, %v572
    %v597 = vsel %vm512, %v596, %v572
    %v598 = vsel %vm511, %v507, %v595
    %v599 = vsel %vm511, 0, %v597
    %v600 = vcosq.f32.pop %v598
    %v601 = vsinq.f32.pop %v598
    %vm602 = vweird.f32 %v507
    %v603 = vadd.s32 %v599, 3
    %v604 = vand.u32 %v603, 3
    %vm605 = vcmp.lt.s32.totalorder %v604, 2
    %vm606 = vcmp.eq.s32.totalorder %v604, 0
    %v607 = vxor.u32 %v601, 2147483648
    %v608 = vsel %vm606, %v600, %v607
    %vm609 = vcmp.eq.s32.totalorder %v604, 2
    %v610 = vxor.u32 %v600, 2147483648
    %v611 = vsel %vm609, %v610, %v601
    %v612 = vsel %vm605, %v608, %v611
    %v613 = vsel %vm602, nan, %v612
    %614 = vst [vmem:[#allocation7] sm:$0xff] %v613
    // Predicated region
    $region18: #{tpu_custom_call.1} parent=1 // pred_check
      _
    $region19: #{tpu_custom_call.1} parent=1 // pred_check_branch
      %616 = sbr.rel (0) target = $region21
    $region20: #{tpu_custom_call.1} parent=1 // pred_region
      %s618 = ssub.s32 128, 64
      %619 = vsyncadd [#allocation4], %s618
      %s620 = sshll.u32 [#allocation7], 4
      %s621 = int_to_ptr.vmem [resolvable:$true] %s620
      %626 = dma.vmem_to_hbm [thread:$0]  %s621, 64, %s2, [#allocation4], 64, 64, 4
    $region21: #{tpu_custom_call.1} parent=1 // pred_fallthru
      _
    // Predicated region
    $region22: #{tpu_custom_call.1} parent=1 // pred_check
      _
    $region23: #{tpu_custom_call.1} parent=1 // pred_check_branch
      %628 = sbr.rel (0) target = $region25
    $region24: #{tpu_custom_call.1} parent=1 // pred_region
      %629 = dma.done [#allocation4], 128
    $region25: #{tpu_custom_call.1} parent=1 // pred_fallthru
      _
    %630 = vsyncpa [#allocation3], 1
    %631 = vsyncpa [#allocation6], 1
    %632 = vsyncpa [#allocation4], 1

</llo_original>
